<compile_context>
chip_gen: v6e
topology: v6e:2x2x1
jax: 0.10.0
libtpu: 0.0.40
codegen_flags: <defaults>
</compile_context>

<pallas_src>
import functools

import jax
import jax.numpy as jnp
from jax.experimental import pallas as pl
from jax.experimental.pallas import tpu as pltpu


def _round_up(x, m):
    return ((x + m - 1) // m) * m


def _cdiv(a, b):
    return (a + b - 1) // b


def _tpu_info():
    """Returns (is_v5, is_v7, vmem_capacity_bytes) with safe fallbacks."""
    kind = ""
    try:
        kind = jax.devices()[0].device_kind.lower()
    except Exception:
        pass
    is_v5 = "v5" in kind
    is_v7 = "v7" in kind
    vmem = None
    try:
        vmem = int(pltpu.get_tpu_info().vmem_capacity_bytes)
    except Exception:
        vmem = None
    if not vmem or vmem <= 0:
        vmem = (64 if is_v7 else 128) * 2**20
    return is_v5, is_v7, vmem


def _layer_norm_f32(x, gamma, beta):
    mean = jnp.mean(x, axis=-1, keepdims=True)
    cen = x - mean
    var = jnp.mean(cen * cen, axis=-1, keepdims=True)
    return cen * jax.lax.rsqrt(var + 1e-6) * gamma + beta


def _pwff_kernel_single(x_ref, gamma_ref, beta_ref, w1_ref, b1_ref, w2_ref,
                        b2_ref, o_ref, *, ew_dtype):
    """ff fits in a single tile: no reduction axis, no accumulator scratch."""
    x = x_ref[...].astype(jnp.float32)
    xn = _layer_norm_f32(x, gamma_ref[...].astype(jnp.float32),
                         beta_ref[...].astype(jnp.float32))
    mm_dtype = w1_ref.dtype
    h = jnp.dot(xn.astype(mm_dtype), w1_ref[...],
                preferred_element_type=jnp.float32)
    # Bias + ReLU + downcast fused in one expression (single pass over h).
    h = jnp.maximum(h.astype(ew_dtype) + b1_ref[...].astype(ew_dtype),
                    0.0).astype(mm_dtype)
    y = jnp.dot(h, w2_ref[...], preferred_element_type=jnp.float32)
    o_ref[...] = (y + b2_ref[...].astype(jnp.float32) + x).astype(o_ref.dtype)


def _pwff_kernel_tiled(x_ref, gamma_ref, beta_ref, w1_ref, b1_ref, w2_ref,
                       b2_ref, o_ref, acc_ref, xnorm_ref, *, ew_dtype):
    """ff split over grid axis 1 (arbitrary) with an f32 VMEM accumulator."""
    k = pl.program_id(1)
    nk = pl.num_programs(1)

    # LayerNorm hoisted out of the k loop: computed once per row tile, cached
    # in VMEM scratch already cast to the matmul dtype.
    @pl.when(k == 0)
    def _():
        acc_ref[...] = jnp.zeros_like(acc_ref)
        x = x_ref[...].astype(jnp.float32)
        xn = _layer_norm_f32(x, gamma_ref[...].astype(jnp.float32),
                             beta_ref[...].astype(jnp.float32))
        xnorm_ref[...] = xn.astype(xnorm_ref.dtype)

    mm_dtype = w1_ref.dtype
    h = jnp.dot(xnorm_ref[...], w1_ref[...], preferred_element_type=jnp.float32)
    h = jnp.maximum(h.astype(ew_dtype) + b1_ref[...].astype(ew_dtype),
                    0.0).astype(mm_dtype)
    acc_ref[...] += jnp.dot(h, w2_ref[...], preferred_element_type=jnp.float32)

    @pl.when(k == nk - 1)
    def _():
        # Residual re-reads x_ref (its block index is constant along k, so the
        # tile stays resident in VMEM) instead of keeping an f32 copy live
        # across all k steps.
        x = x_ref[...].astype(jnp.float32)
        o_ref[...] = (acc_ref[...] + b2_ref[...].astype(jnp.float32)
                      + x).astype(o_ref.dtype)


def positionwise_feed_forward(x, gamma, beta, w1, b1, w2, b2, *,
                              tile_rows=1024, max_ff_tile=None):
    """x: (batch, seq, d_model). w1: (d_model, ff), w2: (ff, d_model).

    Weights are pre-transposed relative to torch Linear (which stores
    (out, in)), so the kernel computes row-major x @ W.
    Returns an array with the same shape/dtype as x.
    """
    batch, seq, d_model = x.shape
    ff = w1.shape[1]
    rows = batch * seq

    is_v5, is_v7, vmem_capacity = _tpu_info()
    vmem_cap = (vmem_capacity * 7) // 8   # headroom for Mosaic internal scratch

    x_bytes = jnp.dtype(x.dtype).itemsize
    w_bytes = jnp.dtype(w1.dtype).itemsize

    # Elementwise (bias + ReLU) dtype for the big (tr, ff_tile) intermediate:
    # bf16 on bf16-capable VPUs (v6e/v7x) when the weights are bf16, else f32.
    if w1.dtype == jnp.bfloat16 and not is_v5:
        ew_dtype = jnp.bfloat16
    else:
        ew_dtype = jnp.float32

    # ---- ff (reduction) tiling: cdiv-based + zero padding; never un-tiled ---
    if max_ff_tile is None:
        max_ff_tile = 1024 if is_v7 else 2048
    if ff <= max_ff_tile:
        n_k, ff_tile, ff_padded = 1, ff, ff
    else:
        n_k = _cdiv(ff, max_ff_tile)
        ff_tile = _round_up(_cdiv(ff, n_k), 128)
        ff_padded = n_k * ff_tile

    # ---- Row tiling: dtype-native sublane granule, as large as VMEM allows --
    row_granule = max(8, 32 // x_bytes)      # 8 f32, 16 bf16, 32 int8/fp8

    def vmem_est(tr):
        est = (4 * tr * d_model * x_bytes                      # x + out (2-buf)
               + 2 * 2 * d_model * ff_tile * w_bytes           # w1 + w2 tiles
               + 2 * (4 * d_model + 2 * ff_tile) * 4           # small params
               + tr * ff_tile * (4 + w_bytes))                 # h temporaries
        if n_k > 1:
            est += tr * d_model * (4 + w_bytes)                # acc + xnorm
        return est

    max_tr = min(_round_up(tile_rows, row_granule), _round_up(rows, row_granule))
    cands = [c for c in (2048, 1024, 512, 256, 128, 64, 32, 16, 8)
             if c % row_granule == 0 and c <= max_tr]
    if max_tr not in cands:
        cands.insert(0, max_tr)
    tr = row_granule
    for c in cands:
        if vmem_est(c) * 5 // 4 > vmem_cap:
            continue
        if is_v7 and rows > row_granule and _cdiv(rows, c) < 2:
            continue   # keep >= 2 row tiles so both v7x TensorCores get work
        tr = c
        break
    padded_rows = _round_up(rows, tr)
    n_row_tiles = padded_rows // tr

    # ---- Operand prep (flatten rows, pad rows / ff, f32 params) -------------
    x2d = x.reshape(rows, d_model)
    if padded_rows != rows:
        # Padded (all-zero) rows see var=0 in LayerNorm (rsqrt(1e-6) ~ 1e3);
        # their outputs are finite garbage and are sliced off below -- keep
        # the [:rows] slice in place if this is ever refactored.
        x2d = jnp.pad(x2d, ((0, padded_rows - rows), (0, 0)))

    w1p, b1p, w2p = w1, b1, w2
    if ff_padded != ff:
        w1p = jnp.pad(w1, ((0, 0), (0, ff_padded - ff)))
        b1p = jnp.pad(b1, ((0, ff_padded - ff),))
        w2p = jnp.pad(w2, ((0, ff_padded - ff), (0, 0)))

    gamma2d = gamma.reshape(1, d_model).astype(jnp.float32)
    beta2d = beta.reshape(1, d_model).astype(jnp.float32)
    b1_2d = b1p.reshape(1, ff_padded).astype(jnp.float32)
    b2_2d = b2.reshape(1, d_model).astype(jnp.float32)

    # ---- Cost estimate (accounts for weight re-streaming when n_k > 1) ------
    weight_passes = n_row_tiles if n_k > 1 else 1
    cost = pl.CostEstimate(
        flops=4 * padded_rows * d_model * ff_padded + 10 * padded_rows * d_model,
        transcendentals=padded_rows,
        bytes_accessed=(2 * padded_rows * d_model * x_bytes
                        + weight_passes * 2 * d_model * ff_padded * w_bytes),
    )
    compiler_params = pltpu.CompilerParams(
        dimension_semantics=(("parallel",) if n_k == 1
                             else ("parallel", "arbitrary")),
        vmem_limit_bytes=int(vmem_cap))

    def run(single_buffer_params):
        if n_k == 1:
            def const_spec(shape):
                # Grid-invariant blocks: fetched once; a second buffer is
                # wasted VMEM, so request single buffering when allowed.
                if single_buffer_params:
                    return pl.BlockSpec(shape, lambda i: (0, 0),
                                        pipeline_mode=pl.Buffered(1))
                return pl.BlockSpec(shape, lambda i: (0, 0))

            grid_spec = pltpu.PrefetchScalarGridSpec(
                num_scalar_prefetch=0,
                grid=(n_row_tiles,),
                in_specs=[
                    pl.BlockSpec((tr, d_model), lambda i: (i, 0)),   # x
                    const_spec((1, d_model)),                        # gamma
                    const_spec((1, d_model)),                        # beta
                    const_spec((d_model, ff_padded)),                # w1
                    const_spec((1, ff_padded)),                      # b1
                    const_spec((ff_padded, d_model)),                # w2
                    const_spec((1, d_model)),                        # b2
                ],
                out_specs=pl.BlockSpec((tr, d_model), lambda i: (i, 0)),
            )
            kernel = functools.partial(_pwff_kernel_single, ew_dtype=ew_dtype)
        else:
            grid_spec = pltpu.PrefetchScalarGridSpec(
                num_scalar_prefetch=0,
                grid=(n_row_tiles, n_k),
                in_specs=[
                    pl.BlockSpec((tr, d_model), lambda i, k: (i, 0)),      # x
                    pl.BlockSpec((1, d_model), lambda i, k: (0, 0)),       # gamma
                    pl.BlockSpec((1, d_model), lambda i, k: (0, 0)),       # beta
                    pl.BlockSpec((d_model, ff_tile), lambda i, k: (0, k)), # w1
                    pl.BlockSpec((1, ff_tile), lambda i, k: (0, k)),       # b1
                    pl.BlockSpec((ff_tile, d_model), lambda i, k: (k, 0)), # w2
                    pl.BlockSpec((1, d_model), lambda i, k: (0, 0)),       # b2
                ],
                out_specs=pl.BlockSpec((tr, d_model), lambda i, k: (i, 0)),
                scratch_shapes=[pltpu.VMEM((tr, d_model), jnp.float32),  # acc
                                pltpu.VMEM((tr, d_model), w1.dtype)],    # xnorm
            )
            kernel = functools.partial(_pwff_kernel_tiled, ew_dtype=ew_dtype)

        out = pl.pallas_call(
            kernel,
            out_shape=jax.ShapeDtypeStruct((padded_rows, d_model), x.dtype),
            grid_spec=grid_spec,
            compiler_params=compiler_params,
            cost_estimate=cost,
        )(x2d, gamma2d, beta2d, w1p, b1_2d, w2p, b2_2d)
        return jax.block_until_ready(out)

    if n_k == 1:
        try:
            out = run(single_buffer_params=True)
        except Exception:
            # pl.Buffered(1) is an optimization only; fall back to defaults.
            out = run(single_buffer_params=False)
    else:
        out = run(single_buffer_params=False)

    return out[:rows].reshape(batch, seq, d_model)


def _reference(x, gamma, beta, w1, b1, w2, b2):
    xf = x.astype(jnp.float32)
    mean = jnp.mean(xf, axis=-1, keepdims=True)
    var = jnp.mean((xf - mean) ** 2, axis=-1, keepdims=True)
    xn = (xf - mean) * jax.lax.rsqrt(var + 1e-6) * gamma + beta
    h = jnp.maximum(xn @ w1.astype(jnp.float32) + b1, 0.0)
    return (h @ w2.astype(jnp.float32) + b2 + xf).astype(x.dtype)


if __name__ == "__main__":
    # Small, lane-dense shapes: batch=2, seq=16, d_model=128, ff=256.
    batch, seq, d_model, ff = 2, 16, 128, 256

    key = jax.random.PRNGKey(0)
    kx, kw1, kb1, kw2, kb2, kw1b, kb1b, kw2b = jax.random.split(key, 8)

    x = jax.random.normal(kx, (batch, seq, d_model), dtype=jnp.float32)
    gamma = jnp.ones((d_model,), dtype=jnp.float32)
    beta = jnp.zeros((d_model,), dtype=jnp.float32)
    # torch Linear weight is (out, in); we pass the transpose (in, out).
    w1 = jax.random.normal(kw1, (d_model, ff), dtype=jnp.float32) * 0.1
    b1 = jax.random.normal(kb1, (ff,), dtype=jnp.float32) * 0.1
    w2 = jax.random.normal(kw2, (ff, d_model), dtype=jnp.float32) * 0.1
    b2 = jax.random.normal(kb2, (d_model,), dtype=jnp.float32) * 0.1

    y_ref = _reference(x, gamma, beta, w1, b1, w2, b2)

    # 1) f32, single-tile ff (n_k == 1) fast path.
    y = positionwise_feed_forward(x, gamma, beta, w1, b1, w2, b2)
    y = jax.block_until_ready(y)
    assert jnp.allclose(y, y_ref, atol=1e-4, rtol=1e-4), "n_k==1 path mismatch"

    # 2) f32, forced ff tiling (n_k == 2): accumulator + hoisted-LayerNorm path.
    y_t = positionwise_feed_forward(x, gamma, beta, w1, b1, w2, b2,
                                    max_ff_tile=128)
    y_t = jax.block_until_ready(y_t)
    assert jnp.allclose(y_t, y_ref, atol=1e-4, rtol=1e-4), "tiled path mismatch"

    # 3) f32, ragged ff (320) tiled by 256 -> cdiv padding to 512.
    ff2 = 320
    w1b = jax.random.normal(kw1b, (d_model, ff2), dtype=jnp.float32) * 0.1
    b1b = jax.random.normal(kb1b, (ff2,), dtype=jnp.float32) * 0.1
    w2b = jax.random.normal(kw2b, (ff2, d_model), dtype=jnp.float32) * 0.1
    y_ref2 = _reference(x, gamma, beta, w1b, b1b, w2b, b2)
    y2 = positionwise_feed_forward(x, gamma, beta, w1b, b1b, w2b, b2,
                                   max_ff_tile=256)
    y2 = jax.block_until_ready(y2)
    assert jnp.allclose(y2, y_ref2, atol=1e-4, rtol=1e-4), "padded ff mismatch"

    # 4) bf16-weight path (MXU/VPU-native); loose tolerance vs f32 reference.
    y_bf = positionwise_feed_forward(
        x, gamma, beta, w1.astype(jnp.bfloat16), b1, w2.astype(jnp.bfloat16), b2)
    y_bf = jax.block_until_ready(y_bf)
    assert bool(jnp.all(jnp.isfinite(y_bf)))
    assert float(jnp.max(jnp.abs(y_bf - y_ref))) < 0.25, "bf16 path drifted"

    print("KERNEL_OK")
</pallas_src>

<mosaic_0001>
module attributes {stable_mosaic.version = 11 : i64} {
  func.func @_pwff_kernel_single(%arg0: i32, %arg1: memref<32x128xf32, #tpu.memory_space<vmem>>, %arg2: memref<1x128xf32, #tpu.memory_space<vmem>>, %arg3: memref<1x128xf32, #tpu.memory_space<vmem>>, %arg4: memref<128x256xf32, #tpu.memory_space<vmem>>, %arg5: memref<1x256xf32, #tpu.memory_space<vmem>>, %arg6: memref<256x128xf32, #tpu.memory_space<vmem>>, %arg7: memref<1x128xf32, #tpu.memory_space<vmem>>, %arg8: memref<32x128xf32, #tpu.memory_space<vmem>>) attributes {dimension_semantics = [#tpu.dimension_semantics<parallel>], iteration_bounds = array<i64: 1>, scalar_prefetch = 0 : i64, scratch_operands = 0 : i64, tpu.core_type = #tpu.core_type<tc>, window_params = [{transform_indices = @transform_0, window_bounds = array<i64: 32, 128>}, {pipeline_mode = #tpu.pipeline_mode<synchronous>, transform_indices = @transform_1, window_bounds = array<i64: 1, 128>}, {pipeline_mode = #tpu.pipeline_mode<synchronous>, transform_indices = @transform_2, window_bounds = array<i64: 1, 128>}, {pipeline_mode = #tpu.pipeline_mode<synchronous>, transform_indices = @transform_3, window_bounds = array<i64: 128, 256>}, {pipeline_mode = #tpu.pipeline_mode<synchronous>, transform_indices = @transform_4, window_bounds = array<i64: 1, 256>}, {pipeline_mode = #tpu.pipeline_mode<synchronous>, transform_indices = @transform_5, window_bounds = array<i64: 256, 128>}, {pipeline_mode = #tpu.pipeline_mode<synchronous>, transform_indices = @transform_6, window_bounds = array<i64: 1, 128>}, {transform_indices = @transform_7, window_bounds = array<i64: 32, 128>}]} {
    %c0 = arith.constant 0 : index
    %c0_0 = arith.constant 0 : index
    %0 = vector.load %arg1[%c0, %c0_0] : memref<32x128xf32, #tpu.memory_space<vmem>>, vector<32x128xf32>
    %c0_1 = arith.constant 0 : index
    %c0_2 = arith.constant 0 : index
    %1 = vector.load %arg2[%c0_1, %c0_2] : memref<1x128xf32, #tpu.memory_space<vmem>>, vector<1x128xf32>
    %c0_3 = arith.constant 0 : index
    %c0_4 = arith.constant 0 : index
    %2 = vector.load %arg3[%c0_3, %c0_4] : memref<1x128xf32, #tpu.memory_space<vmem>>, vector<1x128xf32>
    %cst = arith.constant dense<0.000000e+00> : vector<32xf32>
    %3 = vector.multi_reduction <add>, %0, %cst [1] : vector<32x128xf32> to vector<32xf32>
    %4 = vector.shape_cast %3 : vector<32xf32> to vector<32x1xf32>
    %cst_5 = arith.constant 1.280000e+02 : f32
    %5 = vector.broadcast %cst_5 : f32 to vector<32x1xf32>
    %6 = arith.divf %4, %5 : vector<32x1xf32>
    %7 = vector.broadcast %6 : vector<32x1xf32> to vector<32x128xf32>
    %8 = arith.subf %0, %7 : vector<32x128xf32>
    %9 = arith.mulf %8, %8 : vector<32x128xf32>
    %cst_6 = arith.constant dense<0.000000e+00> : vector<32xf32>
    %10 = vector.multi_reduction <add>, %9, %cst_6 [1] : vector<32x128xf32> to vector<32xf32>
    %11 = vector.shape_cast %10 : vector<32xf32> to vector<32x1xf32>
    %cst_7 = arith.constant 1.280000e+02 : f32
    %12 = vector.broadcast %cst_7 : f32 to vector<32x1xf32>
    %13 = arith.divf %11, %12 : vector<32x1xf32>
    %cst_8 = arith.constant 9.99999997E-7 : f32
    %14 = vector.broadcast %cst_8 : f32 to vector<32x1xf32>
    %15 = arith.addf %13, %14 : vector<32x1xf32>
    %16 = math.rsqrt %15 : vector<32x1xf32>
    %17 = vector.broadcast %16 : vector<32x1xf32> to vector<32x128xf32>
    %18 = arith.mulf %8, %17 : vector<32x128xf32>
    %19 = vector.broadcast %1 : vector<1x128xf32> to vector<32x128xf32>
    %20 = arith.mulf %18, %19 : vector<32x128xf32>
    %21 = vector.broadcast %2 : vector<1x128xf32> to vector<32x128xf32>
    %22 = arith.addf %20, %21 : vector<32x128xf32>
    %c0_9 = arith.constant 0 : index
    %c0_10 = arith.constant 0 : index
    %23 = vector.load %arg4[%c0_9, %c0_10] : memref<128x256xf32, #tpu.memory_space<vmem>>, vector<128x256xf32>
    %cst_11 = arith.constant dense<0.000000e+00> : vector<32x256xf32>
    %24 = tpu.matmul %22, %23, %cst_11 {dimension_numbers = #tpu.dot_dimension_numbers<[1], [0], [0], [1], [0, 0, 1, 1], [], []>} : vector<32x128xf32>, vector<128x256xf32>, vector<32x256xf32> -> vector<32x256xf32>
    %c0_12 = arith.constant 0 : index
    %c0_13 = arith.constant 0 : index
    %25 = vector.load %arg5[%c0_12, %c0_13] : memref<1x256xf32, #tpu.memory_space<vmem>>, vector<1x256xf32>
    %26 = vector.broadcast %25 : vector<1x256xf32> to vector<32x256xf32>
    %27 = arith.addf %24, %26 : vector<32x256xf32>
    %cst_14 = arith.constant 0.000000e+00 : f32
    %28 = vector.broadcast %cst_14 : f32 to vector<32x256xf32>
    %29 = arith.maximumf %27, %28 : vector<32x256xf32>
    %c0_15 = arith.constant 0 : index
    %c0_16 = arith.constant 0 : index
    %30 = vector.load %arg6[%c0_15, %c0_16] : memref<256x128xf32, #tpu.memory_space<vmem>>, vector<256x128xf32>
    %cst_17 = arith.constant dense<0.000000e+00> : vector<32x128xf32>
    %31 = tpu.matmul %29, %30, %cst_17 {dimension_numbers = #tpu.dot_dimension_numbers<[1], [0], [0], [1], [0, 0, 1, 1], [], []>} : vector<32x256xf32>, vector<256x128xf32>, vector<32x128xf32> -> vector<32x128xf32>
    %c0_18 = arith.constant 0 : index
    %c0_19 = arith.constant 0 : index
    %32 = vector.load %arg7[%c0_18, %c0_19] : memref<1x128xf32, #tpu.memory_space<vmem>>, vector<1x128xf32>
    %33 = vector.broadcast %32 : vector<1x128xf32> to vector<32x128xf32>
    %34 = arith.addf %31, %33 : vector<32x128xf32>
    %35 = arith.addf %34, %0 : vector<32x128xf32>
    %c0_20 = arith.constant 0 : index
    %c0_21 = arith.constant 0 : index
    %36 = vector.load %arg8[%c0_20, %c0_21] : memref<32x128xf32, #tpu.memory_space<vmem>>, vector<32x128xf32>
    tpu.vector_store %arg8[%c0_20, %c0_21], %35 {strides = array<i32>} : memref<32x128xf32, #tpu.memory_space<vmem>>, vector<32x128xf32>,
    return
  }
  func.func @transform_0(%arg0: i32) -> (i32, i32) {
    %c0_i32 = arith.constant 0 : i32
    %c0_i32_0 = arith.constant 0 : i32
    return %arg0, %c0_i32 : i32, i32
  }
  func.func @transform_1(%arg0: i32) -> (i32, i32) {
    %c0_i32 = arith.constant 0 : i32
    %c0_i32_0 = arith.constant 0 : i32
    %c0_i32_1 = arith.constant 0 : i32
    return %c0_i32, %c0_i32_0 : i32, i32
  }
  func.func @transform_2(%arg0: i32) -> (i32, i32) {
    %c0_i32 = arith.constant 0 : i32
    %c0_i32_0 = arith.constant 0 : i32
    %c0_i32_1 = arith.constant 0 : i32
    return %c0_i32, %c0_i32_0 : i32, i32
  }
  func.func @transform_3(%arg0: i32) -> (i32, i32) {
    %c0_i32 = arith.constant 0 : i32
    %c0_i32_0 = arith.constant 0 : i32
    %c0_i32_1 = arith.constant 0 : i32
    return %c0_i32, %c0_i32_0 : i32, i32
  }
  func.func @transform_4(%arg0: i32) -> (i32, i32) {
    %c0_i32 = arith.constant 0 : i32
    %c0_i32_0 = arith.constant 0 : i32
    %c0_i32_1 = arith.constant 0 : i32
    return %c0_i32, %c0_i32_0 : i32, i32
  }
  func.func @transform_5(%arg0: i32) -> (i32, i32) {
    %c0_i32 = arith.constant 0 : i32
    %c0_i32_0 = arith.constant 0 : i32
    %c0_i32_1 = arith.constant 0 : i32
    return %c0_i32, %c0_i32_0 : i32, i32
  }
  func.func @transform_6(%arg0: i32) -> (i32, i32) {
    %c0_i32 = arith.constant 0 : i32
    %c0_i32_0 = arith.constant 0 : i32
    %c0_i32_1 = arith.constant 0 : i32
    return %c0_i32, %c0_i32_0 : i32, i32
  }
  func.func @transform_7(%arg0: i32) -> (i32, i32) {
    %c0_i32 = arith.constant 0 : i32
    %c0_i32_0 = arith.constant 0 : i32
    return %arg0, %c0_i32 : i32, i32
  }
}

module attributes {stable_mosaic.version = 11 : i64} {
  func.func @_pwff_kernel_single(%arg0: i32, %arg1: memref<32x128xf32, #tpu.memory_space<vmem>>, %arg2: memref<1x128xf32, #tpu.memory_space<vmem>>, %arg3: memref<1x128xf32, #tpu.memory_space<vmem>>, %arg4: memref<128x256xf32, #tpu.memory_space<vmem>>, %arg5: memref<1x256xf32, #tpu.memory_space<vmem>>, %arg6: memref<256x128xf32, #tpu.memory_space<vmem>>, %arg7: memref<1x128xf32, #tpu.memory_space<vmem>>, %arg8: memref<32x128xf32, #tpu.memory_space<vmem>>) attributes {dimension_semantics = [#tpu.dimension_semantics<parallel>], iteration_bounds = array<i64: 1>, scalar_prefetch = 0 : i64, scratch_operands = 0 : i64, tpu.core_type = #tpu.core_type<tc>, window_params = [{transform_indices = @transform_0, window_bounds = array<i64: 32, 128>}, {pipeline_mode = #tpu.pipeline_mode<synchronous>, transform_indices = @transform_1, window_bounds = array<i64: 1, 128>}, {pipeline_mode = #tpu.pipeline_mode<synchronous>, transform_indices = @transform_2, window_bounds = array<i64: 1, 128>}, {pipeline_mode = #tpu.pipeline_mode<synchronous>, transform_indices = @transform_3, window_bounds = array<i64: 128, 256>}, {pipeline_mode = #tpu.pipeline_mode<synchronous>, transform_indices = @transform_4, window_bounds = array<i64: 1, 256>}, {pipeline_mode = #tpu.pipeline_mode<synchronous>, transform_indices = @transform_5, window_bounds = array<i64: 256, 128>}, {pipeline_mode = #tpu.pipeline_mode<synchronous>, transform_indices = @transform_6, window_bounds = array<i64: 1, 128>}, {transform_indices = @transform_7, window_bounds = array<i64: 32, 128>}]} {
    %c0 = arith.constant 0 : index
    %c0_0 = arith.constant 0 : index
    %0 = vector.load %arg1[%c0, %c0_0] : memref<32x128xf32, #tpu.memory_space<vmem>>, vector<32x128xf32>
    %c0_1 = arith.constant 0 : index
    %c0_2 = arith.constant 0 : index
    %1 = vector.load %arg2[%c0_1, %c0_2] : memref<1x128xf32, #tpu.memory_space<vmem>>, vector<1x128xf32>
    %c0_3 = arith.constant 0 : index
    %c0_4 = arith.constant 0 : index
    %2 = vector.load %arg3[%c0_3, %c0_4] : memref<1x128xf32, #tpu.memory_space<vmem>>, vector<1x128xf32>
    %cst = arith.constant dense<0.000000e+00> : vector<32xf32>
    %3 = vector.multi_reduction <add>, %0, %cst [1] : vector<32x128xf32> to vector<32xf32>
    %4 = vector.shape_cast %3 : vector<32xf32> to vector<32x1xf32>
    %cst_5 = arith.constant 1.280000e+02 : f32
    %5 = vector.broadcast %cst_5 : f32 to vector<32x1xf32>
    %6 = arith.divf %4, %5 : vector<32x1xf32>
    %7 = vector.broadcast %6 : vector<32x1xf32> to vector<32x128xf32>
    %8 = arith.subf %0, %7 : vector<32x128xf32>
    %9 = arith.mulf %8, %8 : vector<32x128xf32>
    %cst_6 = arith.constant dense<0.000000e+00> : vector<32xf32>
    %10 = vector.multi_reduction <add>, %9, %cst_6 [1] : vector<32x128xf32> to vector<32xf32>
    %11 = vector.shape_cast %10 : vector<32xf32> to vector<32x1xf32>
    %cst_7 = arith.constant 1.280000e+02 : f32
    %12 = vector.broadcast %cst_7 : f32 to vector<32x1xf32>
    %13 = arith.divf %11, %12 : vector<32x1xf32>
    %cst_8 = arith.constant 9.99999997E-7 : f32
    %14 = vector.broadcast %cst_8 : f32 to vector<32x1xf32>
    %15 = arith.addf %13, %14 : vector<32x1xf32>
    %16 = math.rsqrt %15 : vector<32x1xf32>
    %17 = vector.broadcast %16 : vector<32x1xf32> to vector<32x128xf32>
    %18 = arith.mulf %8, %17 : vector<32x128xf32>
    %19 = vector.broadcast %1 : vector<1x128xf32> to vector<32x128xf32>
    %20 = arith.mulf %18, %19 : vector<32x128xf32>
    %21 = vector.broadcast %2 : vector<1x128xf32> to vector<32x128xf32>
    %22 = arith.addf %20, %21 : vector<32x128xf32>
    %c0_9 = arith.constant 0 : index
    %c0_10 = arith.constant 0 : index
    %23 = vector.load %arg4[%c0_9, %c0_10] : memref<128x256xf32, #tpu.memory_space<vmem>>, vector<128x256xf32>
    %cst_11 = arith.constant dense<0.000000e+00> : vector<32x256xf32>
    %24 = tpu.matmul %22, %23, %cst_11 {dimension_numbers = #tpu.dot_dimension_numbers<[1], [0], [0], [1], [0, 0, 1, 1], [], []>} : vector<32x128xf32>, vector<128x256xf32>, vector<32x256xf32> -> vector<32x256xf32>
    %c0_12 = arith.constant 0 : index
    %c0_13 = arith.constant 0 : index
    %25 = vector.load %arg5[%c0_12, %c0_13] : memref<1x256xf32, #tpu.memory_space<vmem>>, vector<1x256xf32>
    %26 = vector.broadcast %25 : vector<1x256xf32> to vector<32x256xf32>
    %27 = arith.addf %24, %26 : vector<32x256xf32>
    %cst_14 = arith.constant 0.000000e+00 : f32
    %28 = vector.broadcast %cst_14 : f32 to vector<32x256xf32>
    %29 = arith.maximumf %27, %28 : vector<32x256xf32>
    %c0_15 = arith.constant 0 : index
    %c0_16 = arith.constant 0 : index
    %30 = vector.load %arg6[%c0_15, %c0_16] : memref<256x128xf32, #tpu.memory_space<vmem>>, vector<256x128xf32>
    %cst_17 = arith.constant dense<0.000000e+00> : vector<32x128xf32>
    %31 = tpu.matmul %29, %30, %cst_17 {dimension_numbers = #tpu.dot_dimension_numbers<[1], [0], [0], [1], [0, 0, 1, 1], [], []>} : vector<32x256xf32>, vector<256x128xf32>, vector<32x128xf32> -> vector<32x128xf32>
    %c0_18 = arith.constant 0 : index
    %c0_19 = arith.constant 0 : index
    %32 = vector.load %arg7[%c0_18, %c0_19] : memref<1x128xf32, #tpu.memory_space<vmem>>, vector<1x128xf32>
    %33 = vector.broadcast %32 : vector<1x128xf32> to vector<32x128xf32>
    %34 = arith.addf %31, %33 : vector<32x128xf32>
    %35 = arith.addf %34, %0 : vector<32x128xf32>
    %c0_20 = arith.constant 0 : index
    %c0_21 = arith.constant 0 : index
    %36 = vector.load %arg8[%c0_20, %c0_21] : memref<32x128xf32, #tpu.memory_space<vmem>>, vector<32x128xf32>
    tpu.vector_store %arg8[%c0_20, %c0_21], %35 {strides = array<i32>} : memref<32x128xf32, #tpu.memory_space<vmem>>, vector<32x128xf32>,
    return
  }
  func.func @transform_0(%arg0: i32) -> (i32, i32) {
    %c0_i32 = arith.constant 0 : i32
    %c0_i32_0 = arith.constant 0 : i32
    return %arg0, %c0_i32 : i32, i32
  }
  func.func @transform_1(%arg0: i32) -> (i32, i32) {
    %c0_i32 = arith.constant 0 : i32
    %c0_i32_0 = arith.constant 0 : i32
    %c0_i32_1 = arith.constant 0 : i32
    return %c0_i32, %c0_i32_0 : i32, i32
  }
  func.func @transform_2(%arg0: i32) -> (i32, i32) {
    %c0_i32 = arith.constant 0 : i32
    %c0_i32_0 = arith.constant 0 : i32
    %c0_i32_1 = arith.constant 0 : i32
    return %c0_i32, %c0_i32_0 : i32, i32
  }
  func.func @transform_3(%arg0: i32) -> (i32, i32) {
    %c0_i32 = arith.constant 0 : i32
    %c0_i32_0 = arith.constant 0 : i32
    %c0_i32_1 = arith.constant 0 : i32
    return %c0_i32, %c0_i32_0 : i32, i32
  }
  func.func @transform_4(%arg0: i32) -> (i32, i32) {
    %c0_i32 = arith.constant 0 : i32
    %c0_i32_0 = arith.constant 0 : i32
    %c0_i32_1 = arith.constant 0 : i32
    return %c0_i32, %c0_i32_0 : i32, i32
  }
  func.func @transform_5(%arg0: i32) -> (i32, i32) {
    %c0_i32 = arith.constant 0 : i32
    %c0_i32_0 = arith.constant 0 : i32
    %c0_i32_1 = arith.constant 0 : i32
    return %c0_i32, %c0_i32_0 : i32, i32
  }
  func.func @transform_6(%arg0: i32) -> (i32, i32) {
    %c0_i32 = arith.constant 0 : i32
    %c0_i32_0 = arith.constant 0 : i32
    %c0_i32_1 = arith.constant 0 : i32
    return %c0_i32, %c0_i32_0 : i32, i32
  }
  func.func @transform_7(%arg0: i32) -> (i32, i32) {
    %c0_i32 = arith.constant 0 : i32
    %c0_i32_0 = arith.constant 0 : i32
    return %arg0, %c0_i32 : i32, i32
  }
}

</mosaic_0001>

<llo_original>
// kernel: tpu_custom_call.1
$region0: #{tpu_custom_call.1}
  #allocation0 [shape = 'u32[]', space=smem, size = 0x4, offset = 0x4, fixed_abs, tag = 'smem constant byte address 0x4 - core index']
  #allocation1 [shape = 'u32[144,128]{1,0:T(1,128)}', space=vmem, size = 0x12000, scoped, tag = 'internal scratch']
  %s0 = inlined_call_operand.hbm [shape: f32[32,128], index: 0, kind: input, shape index: {}]
  %s1 = inlined_call_operand.vmem [shape: f32[1,128], index: 1, kind: input, shape index: {}]
  %s2 = inlined_call_operand.hbm [shape: f32[1,128], index: 2, kind: input, shape index: {}]
  %s3 = inlined_call_operand.hbm [shape: f32[128,256], index: 3, kind: input, shape index: {}]
  %s4 = inlined_call_operand.vmem [shape: f32[1,256], index: 4, kind: input, shape index: {}]
  %s5 = inlined_call_operand.hbm [shape: f32[256,128], index: 5, kind: input, shape index: {}]
  %s6 = inlined_call_operand.vmem [shape: f32[1,128], index: 6, kind: input, shape index: {}]
  %s7 = inlined_call_operand.hbm [shape: f32[32,128], index: 7, kind: output, shape index: {}]
  %s8 = sld [smem:[#allocation0]]
  $region54: #{tpu_custom_call.1} parent=0
    _
  %s10 = ssub.s32 1, %s8
  %s11 = scalar_select 0, %s10, %s8
  $region1: #{tpu_custom_call.1} parent=0
    #allocation2 [shape = 'u8[16384]{0}', space=vmem, size = 0x4000, scoped, tag = 'input window, operand 0, single buffered']
    #allocation3 [shape = 's32[1]{0}', space=sflag, size = 0x4, scoped, tag = 'scoped memory for tpu_custom_call.1']
    #allocation4 [shape = 's32[1]{0}', space=sflag, size = 0x4, scoped, tag = 'scoped memory for tpu_custom_call.1']
    #allocation5 [shape = 'u8[512]{0}', space=vmem, size = 0x400, scoped, tag = 'input window, operand 2, single buffered']
    #allocation6 [shape = 's32[1]{0}', space=sflag, size = 0x4, scoped, tag = 'scoped memory for tpu_custom_call.1']
    #allocation7 [shape = 'u8[131072]{0}', space=vmem, size = 0x20000, scoped, tag = 'input window, operand 3, single buffered']
    #allocation8 [shape = 'u8[131072]{0}', space=vmem, size = 0x20000, scoped, tag = 'input window, operand 5, single buffered']
    #allocation9 [shape = 's32[1]{0}', space=sflag, size = 0x4, scoped, tag = 'scoped memory for tpu_custom_call.1']
    #allocation10 [shape = 'u8[16384]{0}', space=vmem, size = 0x4000, scoped, tag = 'output window, operand 0, single buffered']
    %12 = vsyncpa [#allocation3], 0
    %13 = vsyncpa [#allocation6], 0
    %14 = vsyncpa [#allocation9], 0
    %15 = vsyncpa [#allocation4], 0
    // Predicated region
    $region2: #{tpu_custom_call.1} parent=1 // pred_check
      _
    $region3: #{tpu_custom_call.1} parent=1 // pred_check_branch
      %17 = sbr.rel (0) target = $region5
    $region4: #{tpu_custom_call.1} parent=1 // pred_region
      %s19 = ssub.s32 512, 512
      %20 = vsyncadd [#allocation3], %s19
      %s21 = sshll.u32 [#allocation2], 4
      %s22 = int_to_ptr.vmem [resolvable:$true] %s21
      %27 = dma.hbm_to_vmem [thread:$0]  %s0, 512, %s22, [#allocation3], 128, 128, 8
    $region5: #{tpu_custom_call.1} parent=1 // pred_fallthru
      _
    // Predicated region
    $region6: #{tpu_custom_call.1} parent=1 // pred_check
      _
    $region7: #{tpu_custom_call.1} parent=1 // pred_check_branch
      %29 = sbr.rel (0) target = $region9
    $region8: #{tpu_custom_call.1} parent=1 // pred_region
      _
    $region9: #{tpu_custom_call.1} parent=1 // pred_fallthru
      _
    // Predicated region
    $region10: #{tpu_custom_call.1} parent=1 // pred_check
      _
    $region11: #{tpu_custom_call.1} parent=1 // pred_check_branch
      %31 = sbr.rel (0) target = $region13
    $region12: #{tpu_custom_call.1} parent=1 // pred_region
      %s33 = ssub.s32 16, 16
      %34 = vsyncadd [#allocation6], %s33
      %s36 = sshll.u32 [#allocation5], 4
      %s37 = int_to_ptr.vmem [resolvable:$true] %s36
      %39 = dma.hbm_to_vmem [thread:$0]  %s2, 16, %s37, [#allocation6]
    $region13: #{tpu_custom_call.1} parent=1 // pred_fallthru
      _
    // Predicated region
    $region14: #{tpu_custom_call.1} parent=1 // pred_check
      _
    $region15: #{tpu_custom_call.1} parent=1 // pred_check_branch
      %41 = sbr.rel (0) target = $region17
    $region16: #{tpu_custom_call.1} parent=1 // pred_region
      %s43 = ssub.s32 4096, 4096
      %44 = vsyncadd [#allocation6], %s43
      %s45 = sshll.u32 [#allocation7], 4
      %s46 = int_to_ptr.vmem [resolvable:$true] %s45
      %51 = dma.hbm_to_vmem [thread:$0]  %s3, 4096, %s46, [#allocation6], 256, 256, 16
    $region17: #{tpu_custom_call.1} parent=1 // pred_fallthru
      _
    // Predicated region
    $region18: #{tpu_custom_call.1} parent=1 // pred_check
      _
    $region19: #{tpu_custom_call.1} parent=1 // pred_check_branch
      %53 = sbr.rel (0) target = $region21
    $region20: #{tpu_custom_call.1} parent=1 // pred_region
      _
    $region21: #{tpu_custom_call.1} parent=1 // pred_fallthru
      _
    // Predicated region
    $region22: #{tpu_custom_call.1} parent=1 // pred_check
      _
    $region23: #{tpu_custom_call.1} parent=1 // pred_check_branch
      %55 = sbr.rel (0) target = $region25
    $region24: #{tpu_custom_call.1} parent=1 // pred_region
      %s57 = ssub.s32 4096, 4096
      %58 = vsyncadd [#allocation9], %s57
      %s59 = sshll.u32 [#allocation8], 4
      %s60 = int_to_ptr.vmem [resolvable:$true] %s59
      %65 = dma.hbm_to_vmem [thread:$0]  %s5, 4096, %s60, [#allocation9], 128, 128, 8
    $region25: #{tpu_custom_call.1} parent=1 // pred_fallthru
      _
    // Predicated region
    $region26: #{tpu_custom_call.1} parent=1 // pred_check
      _
    $region27: #{tpu_custom_call.1} parent=1 // pred_check_branch
      %67 = sbr.rel (0) target = $region29
    $region28: #{tpu_custom_call.1} parent=1 // pred_region
      _
    $region29: #{tpu_custom_call.1} parent=1 // pred_fallthru
      _
    // Predicated region
    $region30: #{tpu_custom_call.1} parent=1 // pred_check
      _
    $region31: #{tpu_custom_call.1} parent=1 // pred_check_branch
      %69 = sbr.rel (0) target = $region33
    $region32: #{tpu_custom_call.1} parent=1 // pred_region
      %70 = dma.done [#allocation3], 512
    $region33: #{tpu_custom_call.1} parent=1 // pred_fallthru
      _
    // Predicated region
    $region34: #{tpu_custom_call.1} parent=1 // pred_check
      _
    $region35: #{tpu_custom_call.1} parent=1 // pred_check_branch
      %72 = sbr.rel (0) target = $region37
    $region36: #{tpu_custom_call.1} parent=1 // pred_region
      %73 = dma.done [#allocation6], 16
    $region37: #{tpu_custom_call.1} parent=1 // pred_fallthru
      _
    // Predicated region
    $region38: #{tpu_custom_call.1} parent=1 // pred_check
      _
    $region39: #{tpu_custom_call.1} parent=1 // pred_check_branch
      %75 = sbr.rel (0) target = $region41
    $region40: #{tpu_custom_call.1} parent=1 // pred_region
      %76 = dma.done [#allocation6], 4096
    $region41: #{tpu_custom_call.1} parent=1 // pred_fallthru
      _
    // Predicated region
    $region42: #{tpu_custom_call.1} parent=1 // pred_check
      _
    $region43: #{tpu_custom_call.1} parent=1 // pred_check_branch
      %78 = sbr.rel (0) target = $region45
    $region44: #{tpu_custom_call.1} parent=1 // pred_region
      %79 = dma.done [#allocation9], 4096
    $region45: #{tpu_custom_call.1} parent=1 // pred_fallthru
      _
    %v80 = vld [vmem:[#allocation2] sm:$0xff]
    %v81 = vld [vmem:[#allocation2 + $0x8] sm:$0xff]
    %v82 = vld [vmem:[#allocation2 + $0x10] sm:$0xff]
    %v83 = vld [vmem:[#allocation2 + $0x18] sm:$0xff]
    %v84 = vld [vmem:[%s1] sm:$0x1]
    %v85 = vld [vmem:[#allocation5] sm:$0x1]
    %86 = vadd.xlane.f32.xlu0 %v80
    %v87 = vpop.xlane.xlu0 %86
    %88 = vadd.xlane.f32.xlu0 %v81
    %v89 = vpop.xlane.xlu0 %88
    %90 = vadd.xlane.f32.xlu0 %v82
    %v91 = vpop.xlane.xlu0 %90
    %92 = vadd.xlane.f32.xlu0 %v83
    %v93 = vpop.xlane.xlu0 %92
    %v94 = vrcp.pop 128.0
    %v95 = vmul.f32 %v87, %v94
    %v96 = vmul.f32 %v89, %v94
    %v97 = vmul.f32 %v91, %v94
    %v98 = vmul.f32 %v93, %v94
    %v99 = vsub.f32 %v80, %v95
    %v100 = vsub.f32 %v81, %v96
    %v101 = vsub.f32 %v82, %v97
    %v102 = vsub.f32 %v83, %v98
    %v103 = vmul.f32 %v99, %v99
    %v104 = vmul.f32 %v100, %v100
    %v105 = vmul.f32 %v101, %v101
    %v106 = vmul.f32 %v102, %v102
    %107 = vadd.xlane.f32.xlu0 %v103
    %v108 = vpop.xlane.xlu0 %107
    %109 = vadd.xlane.f32.xlu0 %v104
    %v110 = vpop.xlane.xlu0 %109
    %111 = vadd.xlane.f32.xlu0 %v105
    %v112 = vpop.xlane.xlu0 %111
    %113 = vadd.xlane.f32.xlu0 %v106
    %v114 = vpop.xlane.xlu0 %113
    %v115 = vmul.f32 %v108, %v94
    %v116 = vmul.f32 %v110, %v94
    %v117 = vmul.f32 %v112, %v94
    %v118 = vmul.f32 %v114, %v94
    %v119 = vadd.f32 %v115, 1e-06
    %v120 = vadd.f32 %v116, 1e-06
    %v121 = vadd.f32 %v117, 1e-06
    %v122 = vadd.f32 %v118, 1e-06
    %v123 = vrsqrt.pop %v119
    %v124 = vrsqrt.pop %v120
    %v125 = vrsqrt.pop %v121
    %v126 = vrsqrt.pop %v122
    %v127 = vmul.f32 %v99, %v123
    %v128 = vmul.f32 %v100, %v124
    %v129 = vmul.f32 %v101, %v125
    %v130 = vmul.f32 %v102, %v126
    %v132 = vlaneseq
    %v133 = vshrl.u32 %v132, 7
    %v134 = vsub.s32 0, %v133
    %v135 = vrot.slane %v84, %v134
    %v137 = vmul.f32 %v127, %v135
    %v138 = vmul.f32 %v128, %v135
    %v139 = vmul.f32 %v129, %v135
    %v140 = vmul.f32 %v130, %v135
    %v142 = vlaneseq
    %v143 = vshrl.u32 %v142, 7
    %v144 = vsub.s32 0, %v143
    %v145 = vrot.slane %v85, %v144
    %v147 = vadd.f32 %v137, %v145
    %v148 = vadd.f32 %v138, %v145
    %v149 = vadd.f32 %v139, %v145
    %v150 = vadd.f32 %v140, %v145
    %v151 = vld [vmem:[#allocation7] sm:$0xff]
    %v152 = vld [vmem:[#allocation7 + $0x8] sm:$0xff]
    %v153 = vld [vmem:[#allocation7 + $0x10] sm:$0xff]
    %v154 = vld [vmem:[#allocation7 + $0x18] sm:$0xff]
    %v155 = vld [vmem:[#allocation7 + $0x20] sm:$0xff]
    %v156 = vld [vmem:[#allocation7 + $0x28] sm:$0xff]
    %v157 = vld [vmem:[#allocation7 + $0x30] sm:$0xff]
    %v158 = vld [vmem:[#allocation7 + $0x38] sm:$0xff]
    %v159 = vld [vmem:[#allocation7 + $0x40] sm:$0xff]
    %v160 = vld [vmem:[#allocation7 + $0x48] sm:$0xff]
    %v161 = vld [vmem:[#allocation7 + $0x50] sm:$0xff]
    %v162 = vld [vmem:[#allocation7 + $0x58] sm:$0xff]
    %v163 = vld [vmem:[#allocation7 + $0x60] sm:$0xff]
    %v164 = vld [vmem:[#allocation7 + $0x68] sm:$0xff]
    %v165 = vld [vmem:[#allocation7 + $0x70] sm:$0xff]
    %v166 = vld [vmem:[#allocation7 + $0x78] sm:$0xff]
    %v167 = vld [vmem:[#allocation7 + $0x80] sm:$0xff]
    %v168 = vld [vmem:[#allocation7 + $0x88] sm:$0xff]
    %v169 = vld [vmem:[#allocation7 + $0x90] sm:$0xff]
    %v170 = vld [vmem:[#allocation7 + $0x98] sm:$0xff]
    %v171 = vld [vmem:[#allocation7 + $0xa0] sm:$0xff]
    %v172 = vld [vmem:[#allocation7 + $0xa8] sm:$0xff]
    %v173 = vld [vmem:[#allocation7 + $0xb0] sm:$0xff]
    %v174 = vld [vmem:[#allocation7 + $0xb8] sm:$0xff]
    %v175 = vld [vmem:[#allocation7 + $0xc0] sm:$0xff]
    %v176 = vld [vmem:[#allocation7 + $0xc8] sm:$0xff]
    %v177 = vld [vmem:[#allocation7 + $0xd0] sm:$0xff]
    %v178 = vld [vmem:[#allocation7 + $0xd8] sm:$0xff]
    %v179 = vld [vmem:[#allocation7 + $0xe0] sm:$0xff]
    %v180 = vld [vmem:[#allocation7 + $0xe8] sm:$0xff]
    %v181 = vld [vmem:[#allocation7 + $0xf0] sm:$0xff]
    %v182 = vld [vmem:[#allocation7 + $0xf8] sm:$0xff]
    %v183 = vld [vmem:[%s4] sm:$0x3]
    %v185 = vlaneseq
    %v186 = vshrl.u32 %v185, 7
    %v187 = vsub.s32 0, %v186
    %v188 = vrot.slane %v183, %v187
    %v189 = vlaneseq
    %v190 = vshrl.u32 %v189, 7
    %v191 = vsub.s32 1, %v190
    %v192 = vrot.slane %v183, %v191
    %195 = vmatprep.subr.mxu0 %v182
    %196 = vmatpush1.msra.mxu0 %v181
    %197 = vmatprep.subr.mxu0 %v180
    %198 = vmatpush1.msra.mxu0 %v179
    %199 = vmatprep.subr.mxu0 %v178
    %200 = vmatpush1.msra.mxu0 %v177
    %201 = vmatprep.subr.mxu0 %v176
    %202 = vmatpush1.msra.mxu0 %v175
    %203 = vmatprep.subr.mxu0 %v174
    %204 = vmatpush1.msra.mxu0 %v173
    %205 = vmatprep.subr.mxu0 %v172
    %206 = vmatpush1.msra.mxu0 %v171
    %207 = vmatprep.subr.mxu0 %v170
    %208 = vmatpush1.msra.mxu0 %v169
    %209 = vmatprep.subr.mxu0 %v168
    %210 = vmatpush1.msra.mxu0 %v167
    %211 = vmatprep.subr.mxu0 %v166
    %212 = vmatpush1.msra.mxu0 %v165
    %213 = vmatprep.subr.mxu0 %v164
    %214 = vmatpush1.msra.mxu0 %v163
    %215 = vmatprep.subr.mxu0 %v162
    %216 = vmatpush1.msra.mxu0 %v161
    %217 = vmatprep.subr.mxu0 %v160
    %218 = vmatpush1.msra.mxu0 %v159
    %219 = vmatprep.subr.mxu0 %v158
    %220 = vmatpush1.msra.mxu0 %v157
    %221 = vmatprep.subr.mxu0 %v156
    %222 = vmatpush1.msra.mxu0 %v155
    %223 = vmatprep.subr.mxu0 %v154
    %224 = vmatpush1.msra.mxu0 %v153
    %225 = vmatprep.subr.mxu0 %v152
    %226 = vmatpush1.msra.mxu0 %v151
    %227 = vmatprep.subr.mxu0 0.0
    %228 = vmatpush2.msra.mxu0 0.0
    %229 = vmatprep.subr.mxu0 0.0
    %230 = vmatpush2.msra.mxu0 0.0
    %231 = vmatprep.subr.mxu0 0.0
    %232 = vmatpush2.msra.mxu0 0.0
    %233 = vmatprep.subr.mxu0 0.0
    %234 = vmatpush2.msra.mxu0 0.0
    %235 = vmatprep.subr.mxu0 0.0
    %236 = vmatpush2.msra.mxu0 0.0
    %237 = vmatprep.subr.mxu0 0.0
    %238 = vmatpush2.msra.mxu0 0.0
    %239 = vmatprep.subr.mxu0 0.0
    %240 = vmatpush2.msra.mxu0 0.0
    %241 = vmatprep.subr.mxu0 0.0
    %242 = vmatpush2.msra.mxu0 0.0
    %243 = vmatprep.subr.mxu0 0.0
    %244 = vmatpush2.msra.mxu0 0.0
    %245 = vmatprep.subr.mxu0 0.0
    %246 = vmatpush2.msra.mxu0 0.0
    %247 = vmatprep.subr.mxu0 0.0
    %248 = vmatpush2.msra.mxu0 0.0
    %249 = vmatprep.subr.mxu0 0.0
    %250 = vmatpush2.msra.mxu0 0.0
    %251 = vmatprep.subr.mxu0 0.0
    %252 = vmatpush2.msra.mxu0 0.0
    %253 = vmatprep.subr.mxu0 0.0
    %254 = vmatpush2.msra.mxu0 0.0
    %255 = vmatprep.subr.mxu0 0.0
    %256 = vmatpush2.msra.mxu0 0.0
    %257 = vmatprep.subr.mxu0 0.0
    %258 = vmatpush2.msra.mxu0 0.0
    %259 = vmatprep.mubr.f32.mxu0 0.0
    %260 = vmatmul.mubr.f32.gmra.mxu0 %v147
    %v261 = vpop.f32.mrf.mxu0
    %v262 = vadd.f32 %v188, %v261
    %v263 = vpop.f32.mrf.mxu0
    %v264 = vadd.f32 %v192, %v263
    %265 = vmatprep.mubr.f32.mxu0 0.0
    %266 = vmatmul.mubr.f32.gmra.mxu0 %v148
    %v267 = vpop.f32.mrf.mxu0
    %v268 = vadd.f32 %v188, %v267
    %v269 = vpop.f32.mrf.mxu0
    %v270 = vadd.f32 %v192, %v269
    %271 = vmatprep.mubr.f32.mxu0 0.0
    %272 = vmatmul.mubr.f32.gmra.mxu0 %v149
    %v273 = vpop.f32.mrf.mxu0
    %v274 = vadd.f32 %v188, %v273
    %v275 = vpop.f32.mrf.mxu0
    %v276 = vadd.f32 %v192, %v275
    %277 = vmatprep.mubr.f32.mxu0 0.0
    %278 = vmatmul.mubr.f32.gmra.mxu0 %v150
    %v279 = vpop.f32.mrf.mxu0
    %v280 = vadd.f32 %v188, %v279
    %v281 = vpop.f32.mrf.mxu0
    %v282 = vadd.f32 %v192, %v281
    %283 = vdwg.mxu0
    %v284 = vmax.f32 %v262, 0.0
    %v285 = vmax.f32 %v264, 0.0
    %v286 = vmax.f32 %v268, 0.0
    %v287 = vmax.f32 %v270, 0.0
    %v288 = vmax.f32 %v274, 0.0
    %v289 = vmax.f32 %v276, 0.0
    %v290 = vmax.f32 %v280, 0.0
    %v291 = vmax.f32 %v282, 0.0
    %v292 = vld [vmem:[#allocation8] sm:$0xff]
    %v293 = vld [vmem:[#allocation8 + $0x8] sm:$0xff]
    %v294 = vld [vmem:[#allocation8 + $0x10] sm:$0xff]
    %v295 = vld [vmem:[#allocation8 + $0x18] sm:$0xff]
    %v296 = vld [vmem:[#allocation8 + $0x20] sm:$0xff]
    %v297 = vld [vmem:[#allocation8 + $0x28] sm:$0xff]
    %v298 = vld [vmem:[#allocation8 + $0x30] sm:$0xff]
    %v299 = vld [vmem:[#allocation8 + $0x38] sm:$0xff]
    %v300 = vld [vmem:[#allocation8 + $0x40] sm:$0xff]
    %v301 = vld [vmem:[#allocation8 + $0x48] sm:$0xff]
    %v302 = vld [vmem:[#allocation8 + $0x50] sm:$0xff]
    %v303 = vld [vmem:[#allocation8 + $0x58] sm:$0xff]
    %v304 = vld [vmem:[#allocation8 + $0x60] sm:$0xff]
    %v305 = vld [vmem:[#allocation8 + $0x68] sm:$0xff]
    %v306 = vld [vmem:[#allocation8 + $0x70] sm:$0xff]
    %v307 = vld [vmem:[#allocation8 + $0x78] sm:$0xff]
    %v308 = vld [vmem:[#allocation8 + $0x80] sm:$0xff]
    %v309 = vld [vmem:[#allocation8 + $0x88] sm:$0xff]
    %v310 = vld [vmem:[#allocation8 + $0x90] sm:$0xff]
    %v311 = vld [vmem:[#allocation8 + $0x98] sm:$0xff]
    %v312 = vld [vmem:[#allocation8 + $0xa0] sm:$0xff]
    %v313 = vld [vmem:[#allocation8 + $0xa8] sm:$0xff]
    %v314 = vld [vmem:[#allocation8 + $0xb0] sm:$0xff]
    %v315 = vld [vmem:[#allocation8 + $0xb8] sm:$0xff]
    %v316 = vld [vmem:[#allocation8 + $0xc0] sm:$0xff]
    %v317 = vld [vmem:[#allocation8 + $0xc8] sm:$0xff]
    %v318 = vld [vmem:[#allocation8 + $0xd0] sm:$0xff]
    %v319 = vld [vmem:[#allocation8 + $0xd8] sm:$0xff]
    %v320 = vld [vmem:[#allocation8 + $0xe0] sm:$0xff]
    %v321 = vld [vmem:[#allocation8 + $0xe8] sm:$0xff]
    %v322 = vld [vmem:[#allocation8 + $0xf0] sm:$0xff]
    %v323 = vld [vmem:[#allocation8 + $0xf8] sm:$0xff]
    %v324 = vld [vmem:[%s6] sm:$0x1]
    %v326 = vlaneseq
    %v327 = vshrl.u32 %v326, 7
    %v328 = vsub.s32 0, %v327
    %v329 = vrot.slane %v324, %v328
    %331 = vmatprep.subr.mxu0 0.0
    %332 = vmatpush1.msra.mxu0 %v307
    %333 = vmatprep.subr.mxu0 0.0
    %334 = vmatpush1.msra.mxu0 %v306
    %335 = vmatprep.subr.mxu0 0.0
    %336 = vmatpush1.msra.mxu0 %v305
    %337 = vmatprep.subr.mxu0 0.0
    %338 = vmatpush1.msra.mxu0 %v304
    %339 = vmatprep.subr.mxu0 0.0
    %340 = vmatpush1.msra.mxu0 %v303
    %341 = vmatprep.subr.mxu0 0.0
    %342 = vmatpush1.msra.mxu0 %v302
    %343 = vmatprep.subr.mxu0 0.0
    %344 = vmatpush1.msra.mxu0 %v301
    %345 = vmatprep.subr.mxu0 0.0
    %346 = vmatpush1.msra.mxu0 %v300
    %347 = vmatprep.subr.mxu0 0.0
    %348 = vmatpush1.msra.mxu0 %v299
    %349 = vmatprep.subr.mxu0 0.0
    %350 = vmatpush1.msra.mxu0 %v298
    %351 = vmatprep.subr.mxu0 0.0
    %352 = vmatpush1.msra.mxu0 %v297
    %353 = vmatprep.subr.mxu0 0.0
    %354 = vmatpush1.msra.mxu0 %v296
    %355 = vmatprep.subr.mxu0 0.0
    %356 = vmatpush1.msra.mxu0 %v295
    %357 = vmatprep.subr.mxu0 0.0
    %358 = vmatpush1.msra.mxu0 %v294
    %359 = vmatprep.subr.mxu0 0.0
    %360 = vmatpush1.msra.mxu0 %v293
    %361 = vmatprep.subr.mxu0 0.0
    %362 = vmatpush1.msra.mxu0 %v292
    %363 = vmatprep.subr.mxu0 0.0
    %364 = vmatpush2.msra.mxu0 %v323
    %365 = vmatprep.subr.mxu0 0.0
    %366 = vmatpush2.msra.mxu0 %v322
    %367 = vmatprep.subr.mxu0 0.0
    %368 = vmatpush2.msra.mxu0 %v321
    %369 = vmatprep.subr.mxu0 0.0
    %370 = vmatpush2.msra.mxu0 %v320
    %371 = vmatprep.subr.mxu0 0.0
    %372 = vmatpush2.msra.mxu0 %v319
    %373 = vmatprep.subr.mxu0 0.0
    %374 = vmatpush2.msra.mxu0 %v318
    %375 = vmatprep.subr.mxu0 0.0
    %376 = vmatpush2.msra.mxu0 %v317
    %377 = vmatprep.subr.mxu0 0.0
    %378 = vmatpush2.msra.mxu0 %v316
    %379 = vmatprep.subr.mxu0 0.0
    %380 = vmatpush2.msra.mxu0 %v315
    %381 = vmatprep.subr.mxu0 0.0
    %382 = vmatpush2.msra.mxu0 %v314
    %383 = vmatprep.subr.mxu0 0.0
    %384 = vmatpush2.msra.mxu0 %v313
    %385 = vmatprep.subr.mxu0 0.0
    %386 = vmatpush2.msra.mxu0 %v312
    %387 = vmatprep.subr.mxu0 0.0
    %388 = vmatpush2.msra.mxu0 %v311
    %389 = vmatprep.subr.mxu0 0.0
    %390 = vmatpush2.msra.mxu0 %v310
    %391 = vmatprep.subr.mxu0 0.0
    %392 = vmatpush2.msra.mxu0 %v309
    %393 = vmatprep.subr.mxu0 0.0
    %394 = vmatpush2.msra.mxu0 %v308
    %395 = vmatprep.mubr.f32.mxu0 %v285
    %396 = vmatmul.mubr.f32.gmra.mxu0 %v284
    %v397 = vpop.f32.mrf.mxu0
    %v398 = vadd.f32 %v329, %v397
    %v399 = vpop.f32.mrf.mxu0
    %400 = vmatprep.mubr.f32.mxu0 %v287
    %401 = vmatmul.mubr.f32.gmra.mxu0 %v286
    %v402 = vpop.f32.mrf.mxu0
    %v403 = vadd.f32 %v329, %v402
    %v404 = vpop.f32.mrf.mxu0
    %405 = vmatprep.mubr.f32.mxu0 %v289
    %406 = vmatmul.mubr.f32.gmra.mxu0 %v288
    %v407 = vpop.f32.mrf.mxu0
    %v408 = vadd.f32 %v329, %v407
    %v409 = vpop.f32.mrf.mxu0
    %410 = vmatprep.mubr.f32.mxu0 %v291
    %411 = vmatmul.mubr.f32.gmra.mxu0 %v290
    %v412 = vpop.f32.mrf.mxu0
    %v413 = vadd.f32 %v329, %v412
    %v414 = vpop.f32.mrf.mxu0
    %415 = vdwg.mxu0
    %v416 = vadd.f32 %v398, %v80
    %v417 = vadd.f32 %v403, %v81
    %v418 = vadd.f32 %v408, %v82
    %v419 = vadd.f32 %v413, %v83
    %420 = vst [vmem:[#allocation10] sm:$0xff] %v416
    %421 = vst [vmem:[#allocation10 + $0x8] sm:$0xff] %v417
    %422 = vst [vmem:[#allocation10 + $0x10] sm:$0xff] %v418
    %423 = vst [vmem:[#allocation10 + $0x18] sm:$0xff] %v419
    // Predicated region
    $region46: #{tpu_custom_call.1} parent=1 // pred_check
      _
    $region47: #{tpu_custom_call.1} parent=1 // pred_check_branch
      %425 = sbr.rel (0) target = $region49
    $region48: #{tpu_custom_call.1} parent=1 // pred_region
      %s427 = ssub.s32 512, 512
      %428 = vsyncadd [#allocation4], %s427
      %s429 = sshll.u32 [#allocation10], 4
      %s430 = int_to_ptr.vmem [resolvable:$true] %s429
      %435 = dma.vmem_to_hbm [thread:$0]  %s430, 512, %s7, [#allocation4], 128, 128, 8
    $region49: #{tpu_custom_call.1} parent=1 // pred_fallthru
      _
    // Predicated region
    $region50: #{tpu_custom_call.1} parent=1 // pred_check
      _
    $region51: #{tpu_custom_call.1} parent=1 // pred_check_branch
      %437 = sbr.rel (0) target = $region53
    $region52: #{tpu_custom_call.1} parent=1 // pred_region
      %438 = dma.done [#allocation4], 512
    $region53: #{tpu_custom_call.1} parent=1 // pred_fallthru
      _
    %439 = vsyncpa [#allocation3], 1
    %440 = vsyncpa [#allocation6], 1
    %441 = vsyncpa [#allocation9], 1
    %442 = vsyncpa [#allocation4], 1

// kernel: tpu_custom_call.1
$region0: #{tpu_custom_call.1}
  #allocation0 [shape = 'u32[]', space=smem, size = 0x4, offset = 0x4, fixed_abs, tag = 'smem constant byte address 0x4 - core index']
  #allocation1 [shape = 'u32[144,128]{1,0:T(1,128)}', space=vmem, size = 0x12000, scoped, tag = 'internal scratch']
  %s0 = inlined_call_operand.hbm [shape: f32[32,128], index: 0, kind: input, shape index: {}]
  %s1 = inlined_call_operand.vmem [shape: f32[1,128], index: 1, kind: input, shape index: {}]
  %s2 = inlined_call_operand.hbm [shape: f32[1,128], index: 2, kind: input, shape index: {}]
  %s3 = inlined_call_operand.hbm [shape: f32[128,256], index: 3, kind: input, shape index: {}]
  %s4 = inlined_call_operand.vmem [shape: f32[1,256], index: 4, kind: input, shape index: {}]
  %s5 = inlined_call_operand.hbm [shape: f32[256,128], index: 5, kind: input, shape index: {}]
  %s6 = inlined_call_operand.vmem [shape: f32[1,128], index: 6, kind: input, shape index: {}]
  %s7 = inlined_call_operand.hbm [shape: f32[32,128], index: 7, kind: output, shape index: {}]
  %s8 = sld [smem:[#allocation0]]
  $region54: #{tpu_custom_call.1} parent=0
    _
  %s10 = ssub.s32 1, %s8
  %s11 = scalar_select 0, %s10, %s8
  $region1: #{tpu_custom_call.1} parent=0
    #allocation2 [shape = 'u8[16384]{0}', space=vmem, size = 0x4000, scoped, tag = 'input window, operand 0, single buffered']
    #allocation3 [shape = 's32[1]{0}', space=sflag, size = 0x4, scoped, tag = 'scoped memory for tpu_custom_call.1']
    #allocation4 [shape = 's32[1]{0}', space=sflag, size = 0x4, scoped, tag = 'scoped memory for tpu_custom_call.1']
    #allocation5 [shape = 'u8[512]{0}', space=vmem, size = 0x400, scoped, tag = 'input window, operand 2, single buffered']
    #allocation6 [shape = 's32[1]{0}', space=sflag, size = 0x4, scoped, tag = 'scoped memory for tpu_custom_call.1']
    #allocation7 [shape = 'u8[131072]{0}', space=vmem, size = 0x20000, scoped, tag = 'input window, operand 3, single buffered']
    #allocation8 [shape = 'u8[131072]{0}', space=vmem, size = 0x20000, scoped, tag = 'input window, operand 5, single buffered']
    #allocation9 [shape = 's32[1]{0}', space=sflag, size = 0x4, scoped, tag = 'scoped memory for tpu_custom_call.1']
    #allocation10 [shape = 'u8[16384]{0}', space=vmem, size = 0x4000, scoped, tag = 'output window, operand 0, single buffered']
    %12 = vsyncpa [#allocation3], 0
    %13 = vsyncpa [#allocation6], 0
    %14 = vsyncpa [#allocation9], 0
    %15 = vsyncpa [#allocation4], 0
    // Predicated region
    $region2: #{tpu_custom_call.1} parent=1 // pred_check
      _
    $region3: #{tpu_custom_call.1} parent=1 // pred_check_branch
      %17 = sbr.rel (0) target = $region5
    $region4: #{tpu_custom_call.1} parent=1 // pred_region
      %s19 = ssub.s32 512, 512
      %20 = vsyncadd [#allocation3], %s19
      %s21 = sshll.u32 [#allocation2], 4
      %s22 = int_to_ptr.vmem [resolvable:$true] %s21
      %27 = dma.hbm_to_vmem [thread:$0]  %s0, 512, %s22, [#allocation3], 128, 128, 8
    $region5: #{tpu_custom_call.1} parent=1 // pred_fallthru
      _
    // Predicated region
    $region6: #{tpu_custom_call.1} parent=1 // pred_check
      _
    $region7: #{tpu_custom_call.1} parent=1 // pred_check_branch
      %29 = sbr.rel (0) target = $region9
    $region8: #{tpu_custom_call.1} parent=1 // pred_region
      _
    $region9: #{tpu_custom_call.1} parent=1 // pred_fallthru
      _
    // Predicated region
    $region10: #{tpu_custom_call.1} parent=1 // pred_check
      _
    $region11: #{tpu_custom_call.1} parent=1 // pred_check_branch
      %31 = sbr.rel (0) target = $region13
    $region12: #{tpu_custom_call.1} parent=1 // pred_region
      %s33 = ssub.s32 16, 16
      %34 = vsyncadd [#allocation6], %s33
      %s36 = sshll.u32 [#allocation5], 4
      %s37 = int_to_ptr.vmem [resolvable:$true] %s36
      %39 = dma.hbm_to_vmem [thread:$0]  %s2, 16, %s37, [#allocation6]
    $region13: #{tpu_custom_call.1} parent=1 // pred_fallthru
      _
    // Predicated region
    $region14: #{tpu_custom_call.1} parent=1 // pred_check
      _
    $region15: #{tpu_custom_call.1} parent=1 // pred_check_branch
      %41 = sbr.rel (0) target = $region17
    $region16: #{tpu_custom_call.1} parent=1 // pred_region
      %s43 = ssub.s32 4096, 4096
      %44 = vsyncadd [#allocation6], %s43
      %s45 = sshll.u32 [#allocation7], 4
      %s46 = int_to_ptr.vmem [resolvable:$true] %s45
      %51 = dma.hbm_to_vmem [thread:$0]  %s3, 4096, %s46, [#allocation6], 256, 256, 16
    $region17: #{tpu_custom_call.1} parent=1 // pred_fallthru
      _
    // Predicated region
    $region18: #{tpu_custom_call.1} parent=1 // pred_check
      _
    $region19: #{tpu_custom_call.1} parent=1 // pred_check_branch
      %53 = sbr.rel (0) target = $region21
    $region20: #{tpu_custom_call.1} parent=1 // pred_region
      _
    $region21: #{tpu_custom_call.1} parent=1 // pred_fallthru
      _
    // Predicated region
    $region22: #{tpu_custom_call.1} parent=1 // pred_check
      _
    $region23: #{tpu_custom_call.1} parent=1 // pred_check_branch
      %55 = sbr.rel (0) target = $region25
    $region24: #{tpu_custom_call.1} parent=1 // pred_region
      %s57 = ssub.s32 4096, 4096
      %58 = vsyncadd [#allocation9], %s57
      %s59 = sshll.u32 [#allocation8], 4
      %s60 = int_to_ptr.vmem [resolvable:$true] %s59
      %65 = dma.hbm_to_vmem [thread:$0]  %s5, 4096, %s60, [#allocation9], 128, 128, 8
    $region25: #{tpu_custom_call.1} parent=1 // pred_fallthru
      _
    // Predicated region
    $region26: #{tpu_custom_call.1} parent=1 // pred_check
      _
    $region27: #{tpu_custom_call.1} parent=1 // pred_check_branch
      %67 = sbr.rel (0) target = $region29
    $region28: #{tpu_custom_call.1} parent=1 // pred_region
      _
    $region29: #{tpu_custom_call.1} parent=1 // pred_fallthru
      _
    // Predicated region
    $region30: #{tpu_custom_call.1} parent=1 // pred_check
      _
    $region31: #{tpu_custom_call.1} parent=1 // pred_check_branch
      %69 = sbr.rel (0) target = $region33
    $region32: #{tpu_custom_call.1} parent=1 // pred_region
      %70 = dma.done [#allocation3], 512
    $region33: #{tpu_custom_call.1} parent=1 // pred_fallthru
      _
    // Predicated region
    $region34: #{tpu_custom_call.1} parent=1 // pred_check
      _
    $region35: #{tpu_custom_call.1} parent=1 // pred_check_branch
      %72 = sbr.rel (0) target = $region37
    $region36: #{tpu_custom_call.1} parent=1 // pred_region
      %73 = dma.done [#allocation6], 16
    $region37: #{tpu_custom_call.1} parent=1 // pred_fallthru
      _
    // Predicated region
    $region38: #{tpu_custom_call.1} parent=1 // pred_check
      _
    $region39: #{tpu_custom_call.1} parent=1 // pred_check_branch
      %75 = sbr.rel (0) target = $region41
    $region40: #{tpu_custom_call.1} parent=1 // pred_region
      %76 = dma.done [#allocation6], 4096
    $region41: #{tpu_custom_call.1} parent=1 // pred_fallthru
      _
    // Predicated region
    $region42: #{tpu_custom_call.1} parent=1 // pred_check
      _
    $region43: #{tpu_custom_call.1} parent=1 // pred_check_branch
      %78 = sbr.rel (0) target = $region45
    $region44: #{tpu_custom_call.1} parent=1 // pred_region
      %79 = dma.done [#allocation9], 4096
    $region45: #{tpu_custom_call.1} parent=1 // pred_fallthru
      _
    %v80 = vld [vmem:[#allocation2] sm:$0xff]
    %v81 = vld [vmem:[#allocation2 + $0x8] sm:$0xff]
    %v82 = vld [vmem:[#allocation2 + $0x10] sm:$0xff]
    %v83 = vld [vmem:[#allocation2 + $0x18] sm:$0xff]
    %v84 = vld [vmem:[%s1] sm:$0x1]
    %v85 = vld [vmem:[#allocation5] sm:$0x1]
    %86 = vadd.xlane.f32.xlu0 %v80
    %v87 = vpop.xlane.xlu0 %86
    %88 = vadd.xlane.f32.xlu0 %v81
    %v89 = vpop.xlane.xlu0 %88
    %90 = vadd.xlane.f32.xlu0 %v82
    %v91 = vpop.xlane.xlu0 %90
    %92 = vadd.xlane.f32.xlu0 %v83
    %v93 = vpop.xlane.xlu0 %92
    %v94 = vrcp.pop 128.0
    %v95 = vmul.f32 %v87, %v94
    %v96 = vmul.f32 %v89, %v94
    %v97 = vmul.f32 %v91, %v94
    %v98 = vmul.f32 %v93, %v94
    %v99 = vsub.f32 %v80, %v95
    %v100 = vsub.f32 %v81, %v96
    %v101 = vsub.f32 %v82, %v97
    %v102 = vsub.f32 %v83, %v98
    %v103 = vmul.f32 %v99, %v99
    %v104 = vmul.f32 %v100, %v100
    %v105 = vmul.f32 %v101, %v101
    %v106 = vmul.f32 %v102, %v102
    %107 = vadd.xlane.f32.xlu0 %v103
    %v108 = vpop.xlane.xlu0 %107
    %109 = vadd.xlane.f32.xlu0 %v104
    %v110 = vpop.xlane.xlu0 %109
    %111 = vadd.xlane.f32.xlu0 %v105
    %v112 = vpop.xlane.xlu0 %111
    %113 = vadd.xlane.f32.xlu0 %v106
    %v114 = vpop.xlane.xlu0 %113
    %v115 = vmul.f32 %v108, %v94
    %v116 = vmul.f32 %v110, %v94
    %v117 = vmul.f32 %v112, %v94
    %v118 = vmul.f32 %v114, %v94
    %v119 = vadd.f32 %v115, 1e-06
    %v120 = vadd.f32 %v116, 1e-06
    %v121 = vadd.f32 %v117, 1e-06
    %v122 = vadd.f32 %v118, 1e-06
    %v123 = vrsqrt.pop %v119
    %v124 = vrsqrt.pop %v120
    %v125 = vrsqrt.pop %v121
    %v126 = vrsqrt.pop %v122
    %v127 = vmul.f32 %v99, %v123
    %v128 = vmul.f32 %v100, %v124
    %v129 = vmul.f32 %v101, %v125
    %v130 = vmul.f32 %v102, %v126
    %v132 = vlaneseq
    %v133 = vshrl.u32 %v132, 7
    %v134 = vsub.s32 0, %v133
    %v135 = vrot.slane %v84, %v134
    %v137 = vmul.f32 %v127, %v135
    %v138 = vmul.f32 %v128, %v135
    %v139 = vmul.f32 %v129, %v135
    %v140 = vmul.f32 %v130, %v135
    %v142 = vlaneseq
    %v143 = vshrl.u32 %v142, 7
    %v144 = vsub.s32 0, %v143
    %v145 = vrot.slane %v85, %v144
    %v147 = vadd.f32 %v137, %v145
    %v148 = vadd.f32 %v138, %v145
    %v149 = vadd.f32 %v139, %v145
    %v150 = vadd.f32 %v140, %v145
    %v151 = vld [vmem:[#allocation7] sm:$0xff]
    %v152 = vld [vmem:[#allocation7 + $0x8] sm:$0xff]
    %v153 = vld [vmem:[#allocation7 + $0x10] sm:$0xff]
    %v154 = vld [vmem:[#allocation7 + $0x18] sm:$0xff]
    %v155 = vld [vmem:[#allocation7 + $0x20] sm:$0xff]
    %v156 = vld [vmem:[#allocation7 + $0x28] sm:$0xff]
    %v157 = vld [vmem:[#allocation7 + $0x30] sm:$0xff]
    %v158 = vld [vmem:[#allocation7 + $0x38] sm:$0xff]
    %v159 = vld [vmem:[#allocation7 + $0x40] sm:$0xff]
    %v160 = vld [vmem:[#allocation7 + $0x48] sm:$0xff]
    %v161 = vld [vmem:[#allocation7 + $0x50] sm:$0xff]
    %v162 = vld [vmem:[#allocation7 + $0x58] sm:$0xff]
    %v163 = vld [vmem:[#allocation7 + $0x60] sm:$0xff]
    %v164 = vld [vmem:[#allocation7 + $0x68] sm:$0xff]
    %v165 = vld [vmem:[#allocation7 + $0x70] sm:$0xff]
    %v166 = vld [vmem:[#allocation7 + $0x78] sm:$0xff]
    %v167 = vld [vmem:[#allocation7 + $0x80] sm:$0xff]
    %v168 = vld [vmem:[#allocation7 + $0x88] sm:$0xff]
    %v169 = vld [vmem:[#allocation7 + $0x90] sm:$0xff]
    %v170 = vld [vmem:[#allocation7 + $0x98] sm:$0xff]
    %v171 = vld [vmem:[#allocation7 + $0xa0] sm:$0xff]
    %v172 = vld [vmem:[#allocation7 + $0xa8] sm:$0xff]
    %v173 = vld [vmem:[#allocation7 + $0xb0] sm:$0xff]
    %v174 = vld [vmem:[#allocation7 + $0xb8] sm:$0xff]
    %v175 = vld [vmem:[#allocation7 + $0xc0] sm:$0xff]
    %v176 = vld [vmem:[#allocation7 + $0xc8] sm:$0xff]
    %v177 = vld [vmem:[#allocation7 + $0xd0] sm:$0xff]
    %v178 = vld [vmem:[#allocation7 + $0xd8] sm:$0xff]
    %v179 = vld [vmem:[#allocation7 + $0xe0] sm:$0xff]
    %v180 = vld [vmem:[#allocation7 + $0xe8] sm:$0xff]
    %v181 = vld [vmem:[#allocation7 + $0xf0] sm:$0xff]
    %v182 = vld [vmem:[#allocation7 + $0xf8] sm:$0xff]
    %v183 = vld [vmem:[%s4] sm:$0x3]
    %v185 = vlaneseq
    %v186 = vshrl.u32 %v185, 7
    %v187 = vsub.s32 0, %v186
    %v188 = vrot.slane %v183, %v187
    %v189 = vlaneseq
    %v190 = vshrl.u32 %v189, 7
    %v191 = vsub.s32 1, %v190
    %v192 = vrot.slane %v183, %v191
    %195 = vmatprep.subr.mxu0 %v182
    %196 = vmatpush1.msra.mxu0 %v181
    %197 = vmatprep.subr.mxu0 %v180
    %198 = vmatpush1.msra.mxu0 %v179
    %199 = vmatprep.subr.mxu0 %v178
    %200 = vmatpush1.msra.mxu0 %v177
    %201 = vmatprep.subr.mxu0 %v176
    %202 = vmatpush1.msra.mxu0 %v175
    %203 = vmatprep.subr.mxu0 %v174
    %204 = vmatpush1.msra.mxu0 %v173
    %205 = vmatprep.subr.mxu0 %v172
    %206 = vmatpush1.msra.mxu0 %v171
    %207 = vmatprep.subr.mxu0 %v170
    %208 = vmatpush1.msra.mxu0 %v169
    %209 = vmatprep.subr.mxu0 %v168
    %210 = vmatpush1.msra.mxu0 %v167
    %211 = vmatprep.subr.mxu0 %v166
    %212 = vmatpush1.msra.mxu0 %v165
    %213 = vmatprep.subr.mxu0 %v164
    %214 = vmatpush1.msra.mxu0 %v163
    %215 = vmatprep.subr.mxu0 %v162
    %216 = vmatpush1.msra.mxu0 %v161
    %217 = vmatprep.subr.mxu0 %v160
    %218 = vmatpush1.msra.mxu0 %v159
    %219 = vmatprep.subr.mxu0 %v158
    %220 = vmatpush1.msra.mxu0 %v157
    %221 = vmatprep.subr.mxu0 %v156
    %222 = vmatpush1.msra.mxu0 %v155
    %223 = vmatprep.subr.mxu0 %v154
    %224 = vmatpush1.msra.mxu0 %v153
    %225 = vmatprep.subr.mxu0 %v152
    %226 = vmatpush1.msra.mxu0 %v151
    %227 = vmatprep.subr.mxu0 0.0
    %228 = vmatpush2.msra.mxu0 0.0
    %229 = vmatprep.subr.mxu0 0.0
    %230 = vmatpush2.msra.mxu0 0.0
    %231 = vmatprep.subr.mxu0 0.0
    %232 = vmatpush2.msra.mxu0 0.0
    %233 = vmatprep.subr.mxu0 0.0
    %234 = vmatpush2.msra.mxu0 0.0
    %235 = vmatprep.subr.mxu0 0.0
    %236 = vmatpush2.msra.mxu0 0.0
    %237 = vmatprep.subr.mxu0 0.0
    %238 = vmatpush2.msra.mxu0 0.0
    %239 = vmatprep.subr.mxu0 0.0
    %240 = vmatpush2.msra.mxu0 0.0
    %241 = vmatprep.subr.mxu0 0.0
    %242 = vmatpush2.msra.mxu0 0.0
    %243 = vmatprep.subr.mxu0 0.0
    %244 = vmatpush2.msra.mxu0 0.0
    %245 = vmatprep.subr.mxu0 0.0
    %246 = vmatpush2.msra.mxu0 0.0
    %247 = vmatprep.subr.mxu0 0.0
    %248 = vmatpush2.msra.mxu0 0.0
    %249 = vmatprep.subr.mxu0 0.0
    %250 = vmatpush2.msra.mxu0 0.0
    %251 = vmatprep.subr.mxu0 0.0
    %252 = vmatpush2.msra.mxu0 0.0
    %253 = vmatprep.subr.mxu0 0.0
    %254 = vmatpush2.msra.mxu0 0.0
    %255 = vmatprep.subr.mxu0 0.0
    %256 = vmatpush2.msra.mxu0 0.0
    %257 = vmatprep.subr.mxu0 0.0
    %258 = vmatpush2.msra.mxu0 0.0
    %259 = vmatprep.mubr.f32.mxu0 0.0
    %260 = vmatmul.mubr.f32.gmra.mxu0 %v147
    %v261 = vpop.f32.mrf.mxu0
    %v262 = vadd.f32 %v188, %v261
    %v263 = vpop.f32.mrf.mxu0
    %v264 = vadd.f32 %v192, %v263
    %265 = vmatprep.mubr.f32.mxu0 0.0
    %266 = vmatmul.mubr.f32.gmra.mxu0 %v148
    %v267 = vpop.f32.mrf.mxu0
    %v268 = vadd.f32 %v188, %v267
    %v269 = vpop.f32.mrf.mxu0
    %v270 = vadd.f32 %v192, %v269
    %271 = vmatprep.mubr.f32.mxu0 0.0
    %272 = vmatmul.mubr.f32.gmra.mxu0 %v149
    %v273 = vpop.f32.mrf.mxu0
    %v274 = vadd.f32 %v188, %v273
    %v275 = vpop.f32.mrf.mxu0
    %v276 = vadd.f32 %v192, %v275
    %277 = vmatprep.mubr.f32.mxu0 0.0
    %278 = vmatmul.mubr.f32.gmra.mxu0 %v150
    %v279 = vpop.f32.mrf.mxu0
    %v280 = vadd.f32 %v188, %v279
    %v281 = vpop.f32.mrf.mxu0
    %v282 = vadd.f32 %v192, %v281
    %283 = vdwg.mxu0
    %v284 = vmax.f32 %v262, 0.0
    %v285 = vmax.f32 %v264, 0.0
    %v286 = vmax.f32 %v268, 0.0
    %v287 = vmax.f32 %v270, 0.0
    %v288 = vmax.f32 %v274, 0.0
    %v289 = vmax.f32 %v276, 0.0
    %v290 = vmax.f32 %v280, 0.0
    %v291 = vmax.f32 %v282, 0.0
    %v292 = vld [vmem:[#allocation8] sm:$0xff]
    %v293 = vld [vmem:[#allocation8 + $0x8] sm:$0xff]
    %v294 = vld [vmem:[#allocation8 + $0x10] sm:$0xff]
    %v295 = vld [vmem:[#allocation8 + $0x18] sm:$0xff]
    %v296 = vld [vmem:[#allocation8 + $0x20] sm:$0xff]
    %v297 = vld [vmem:[#allocation8 + $0x28] sm:$0xff]
    %v298 = vld [vmem:[#allocation8 + $0x30] sm:$0xff]
    %v299 = vld [vmem:[#allocation8 + $0x38] sm:$0xff]
    %v300 = vld [vmem:[#allocation8 + $0x40] sm:$0xff]
    %v301 = vld [vmem:[#allocation8 + $0x48] sm:$0xff]
    %v302 = vld [vmem:[#allocation8 + $0x50] sm:$0xff]
    %v303 = vld [vmem:[#allocation8 + $0x58] sm:$0xff]
    %v304 = vld [vmem:[#allocation8 + $0x60] sm:$0xff]
    %v305 = vld [vmem:[#allocation8 + $0x68] sm:$0xff]
    %v306 = vld [vmem:[#allocation8 + $0x70] sm:$0xff]
    %v307 = vld [vmem:[#allocation8 + $0x78] sm:$0xff]
    %v308 = vld [vmem:[#allocation8 + $0x80] sm:$0xff]
    %v309 = vld [vmem:[#allocation8 + $0x88] sm:$0xff]
    %v310 = vld [vmem:[#allocation8 + $0x90] sm:$0xff]
    %v311 = vld [vmem:[#allocation8 + $0x98] sm:$0xff]
    %v312 = vld [vmem:[#allocation8 + $0xa0] sm:$0xff]
    %v313 = vld [vmem:[#allocation8 + $0xa8] sm:$0xff]
    %v314 = vld [vmem:[#allocation8 + $0xb0] sm:$0xff]
    %v315 = vld [vmem:[#allocation8 + $0xb8] sm:$0xff]
    %v316 = vld [vmem:[#allocation8 + $0xc0] sm:$0xff]
    %v317 = vld [vmem:[#allocation8 + $0xc8] sm:$0xff]
    %v318 = vld [vmem:[#allocation8 + $0xd0] sm:$0xff]
    %v319 = vld [vmem:[#allocation8 + $0xd8] sm:$0xff]
    %v320 = vld [vmem:[#allocation8 + $0xe0] sm:$0xff]
    %v321 = vld [vmem:[#allocation8 + $0xe8] sm:$0xff]
    %v322 = vld [vmem:[#allocation8 + $0xf0] sm:$0xff]
    %v323 = vld [vmem:[#allocation8 + $0xf8] sm:$0xff]
    %v324 = vld [vmem:[%s6] sm:$0x1]
    %v326 = vlaneseq
    %v327 = vshrl.u32 %v326, 7
    %v328 = vsub.s32 0, %v327
    %v329 = vrot.slane %v324, %v328
    %331 = vmatprep.subr.mxu0 0.0
    %332 = vmatpush1.msra.mxu0 %v307
    %333 = vmatprep.subr.mxu0 0.0
    %334 = vmatpush1.msra.mxu0 %v306
    %335 = vmatprep.subr.mxu0 0.0
    %336 = vmatpush1.msra.mxu0 %v305
    %337 = vmatprep.subr.mxu0 0.0
    %338 = vmatpush1.msra.mxu0 %v304
    %339 = vmatprep.subr.mxu0 0.0
    %340 = vmatpush1.msra.mxu0 %v303
    %341 = vmatprep.subr.mxu0 0.0
    %342 = vmatpush1.msra.mxu0 %v302
    %343 = vmatprep.subr.mxu0 0.0
    %344 = vmatpush1.msra.mxu0 %v301
    %345 = vmatprep.subr.mxu0 0.0
    %346 = vmatpush1.msra.mxu0 %v300
    %347 = vmatprep.subr.mxu0 0.0
    %348 = vmatpush1.msra.mxu0 %v299
    %349 = vmatprep.subr.mxu0 0.0
    %350 = vmatpush1.msra.mxu0 %v298
    %351 = vmatprep.subr.mxu0 0.0
    %352 = vmatpush1.msra.mxu0 %v297
    %353 = vmatprep.subr.mxu0 0.0
    %354 = vmatpush1.msra.mxu0 %v296
    %355 = vmatprep.subr.mxu0 0.0
    %356 = vmatpush1.msra.mxu0 %v295
    %357 = vmatprep.subr.mxu0 0.0
    %358 = vmatpush1.msra.mxu0 %v294
    %359 = vmatprep.subr.mxu0 0.0
    %360 = vmatpush1.msra.mxu0 %v293
    %361 = vmatprep.subr.mxu0 0.0
    %362 = vmatpush1.msra.mxu0 %v292
    %363 = vmatprep.subr.mxu0 0.0
    %364 = vmatpush2.msra.mxu0 %v323
    %365 = vmatprep.subr.mxu0 0.0
    %366 = vmatpush2.msra.mxu0 %v322
    %367 = vmatprep.subr.mxu0 0.0
    %368 = vmatpush2.msra.mxu0 %v321
    %369 = vmatprep.subr.mxu0 0.0
    %370 = vmatpush2.msra.mxu0 %v320
    %371 = vmatprep.subr.mxu0 0.0
    %372 = vmatpush2.msra.mxu0 %v319
    %373 = vmatprep.subr.mxu0 0.0
    %374 = vmatpush2.msra.mxu0 %v318
    %375 = vmatprep.subr.mxu0 0.0
    %376 = vmatpush2.msra.mxu0 %v317
    %377 = vmatprep.subr.mxu0 0.0
    %378 = vmatpush2.msra.mxu0 %v316
    %379 = vmatprep.subr.mxu0 0.0
    %380 = vmatpush2.msra.mxu0 %v315
    %381 = vmatprep.subr.mxu0 0.0
    %382 = vmatpush2.msra.mxu0 %v314
    %383 = vmatprep.subr.mxu0 0.0
    %384 = vmatpush2.msra.mxu0 %v313
    %385 = vmatprep.subr.mxu0 0.0
    %386 = vmatpush2.msra.mxu0 %v312
    %387 = vmatprep.subr.mxu0 0.0
    %388 = vmatpush2.msra.mxu0 %v311
    %389 = vmatprep.subr.mxu0 0.0
    %390 = vmatpush2.msra.mxu0 %v310
    %391 = vmatprep.subr.mxu0 0.0
    %392 = vmatpush2.msra.mxu0 %v309
    %393 = vmatprep.subr.mxu0 0.0
    %394 = vmatpush2.msra.mxu0 %v308
    %395 = vmatprep.mubr.f32.mxu0 %v285
    %396 = vmatmul.mubr.f32.gmra.mxu0 %v284
    %v397 = vpop.f32.mrf.mxu0
    %v398 = vadd.f32 %v329, %v397
    %v399 = vpop.f32.mrf.mxu0
    %400 = vmatprep.mubr.f32.mxu0 %v287
    %401 = vmatmul.mubr.f32.gmra.mxu0 %v286
    %v402 = vpop.f32.mrf.mxu0
    %v403 = vadd.f32 %v329, %v402
    %v404 = vpop.f32.mrf.mxu0
    %405 = vmatprep.mubr.f32.mxu0 %v289
    %406 = vmatmul.mubr.f32.gmra.mxu0 %v288
    %v407 = vpop.f32.mrf.mxu0
    %v408 = vadd.f32 %v329, %v407
    %v409 = vpop.f32.mrf.mxu0
    %410 = vmatprep.mubr.f32.mxu0 %v291
    %411 = vmatmul.mubr.f32.gmra.mxu0 %v290
    %v412 = vpop.f32.mrf.mxu0
    %v413 = vadd.f32 %v329, %v412
    %v414 = vpop.f32.mrf.mxu0
    %415 = vdwg.mxu0
    %v416 = vadd.f32 %v398, %v80
    %v417 = vadd.f32 %v403, %v81
    %v418 = vadd.f32 %v408, %v82
    %v419 = vadd.f32 %v413, %v83
    %420 = vst [vmem:[#allocation10] sm:$0xff] %v416
    %421 = vst [vmem:[#allocation10 + $0x8] sm:$0xff] %v417
    %422 = vst [vmem:[#allocation10 + $0x10] sm:$0xff] %v418
    %423 = vst [vmem:[#allocation10 + $0x18] sm:$0xff] %v419
    // Predicated region
    $region46: #{tpu_custom_call.1} parent=1 // pred_check
      _
    $region47: #{tpu_custom_call.1} parent=1 // pred_check_branch
      %425 = sbr.rel (0) target = $region49
    $region48: #{tpu_custom_call.1} parent=1 // pred_region
      %s427 = ssub.s32 512, 512
      %428 = vsyncadd [#allocation4], %s427
      %s429 = sshll.u32 [#allocation10], 4
      %s430 = int_to_ptr.vmem [resolvable:$true] %s429
      %435 = dma.vmem_to_hbm [thread:$0]  %s430, 512, %s7, [#allocation4], 128, 128, 8
    $region49: #{tpu_custom_call.1} parent=1 // pred_fallthru
      _
    // Predicated region
    $region50: #{tpu_custom_call.1} parent=1 // pred_check
      _
    $region51: #{tpu_custom_call.1} parent=1 // pred_check_branch
      %437 = sbr.rel (0) target = $region53
    $region52: #{tpu_custom_call.1} parent=1 // pred_region
      %438 = dma.done [#allocation4], 512
    $region53: #{tpu_custom_call.1} parent=1 // pred_fallthru
      _
    %439 = vsyncpa [#allocation3], 1
    %440 = vsyncpa [#allocation6], 1
    %441 = vsyncpa [#allocation9], 1
    %442 = vsyncpa [#allocation4], 1

</llo_original>
